<compile_context>
chip_gen: v5e
topology: v5e:2x2
jax: 0.10.0
libtpu: 0.0.40
codegen_flags: <defaults>
</compile_context>

<pallas_src>
import functools

import jax
import jax.numpy as jnp
from jax.experimental import pallas as pl
from jax.experimental.pallas import tpu as pltpu

CE_WEIGHT = 1.0
DICE_WEIGHT = 1.0
SMOOTH = 1.0

_LANES = 128
_CHUNK_ROWS = 256          # rows of 128 lanes per in-kernel sub-chunk


def _max_block_rows():
    """Rows of 128 lanes per grid block, sized per TPU generation."""
    try:
        kind = jax.devices()[0].device_kind.lower()
    except Exception:
        return 2048
    if "v5 lite" in kind or "v5e" in kind or "v5litepod" in kind:
        return 2048        # v5e: already HBM-bound; keep the footprint modest
    return 4096            # v6e/v7x: ~12 MiB double-buffered, amortizes step cost


def _loss_sums_kernel(pred_ref, t_ref, out_ref, *,
                      n_tile, r_tile, chunk_rows, acc_rows,
                      n_imgs, valid_pix, rows_full, rows_any, whole_image):
    """Accumulate per-image-block partial sums of [CE, p1*t, p1, t].

    pred_ref: (n_tile, 2, r_tile, 128) logits block.
    t_ref:    (n_tile, r_tile, 128) integer class indices (assumed in {0,1}).
    out_ref:  (1, 4, acc_rows, 128) f32 partial sums; resident across the row
              grid axis (same block index for every ri) -> accumulator output.
    """
    ni = pl.program_id(0)
    ri = pl.program_id(1)

    @pl.when(ri == 0)
    def _():
        out_ref[...] = jnp.zeros_like(out_ref)

    def chunk_sums(img, c0, mask_row_base):
        """Partial sums of one (chunk_rows, 128) sub-chunk of one image.

        Channels are sliced directly off the ref (no full-block load), so live
        temporaries stay ~chunk_rows/8 vregs each. Returns four tree-reduced
        (acc_rows, 128) f32 partials.
        """
        l0 = pred_ref[img, 0, pl.ds(c0, chunk_rows), :].astype(jnp.float32)
        l1 = pred_ref[img, 1, pl.ds(c0, chunk_rows), :].astype(jnp.float32)
        tf = t_ref[img, pl.ds(c0, chunk_rows), :].astype(jnp.float32)

        # 2-class softmax math via d = l1 - l0 (two EUP exp + one EUP log):
        #   CE = softplus((1-2t)*d) = max(x,0) + log(1+exp(-|d|))
        #   p1 = sigmoid(d)         = exp(min(d,0) - log(1+exp(-|d|)))
        d = l1 - l0
        e = jnp.exp(-jnp.abs(d))
        log1pe = jnp.log(1.0 + e)
        x = jnp.where(tf > 0.5, -d, d)           # (1 - 2t) * d, stable sign
        ce = jnp.maximum(x, 0.0) + log1pe
        p1 = jnp.exp(jnp.minimum(d, 0.0) - log1pe)

        if mask_row_base is not None:
            # Only the remainder sub-chunk (or the ragged-HW fallback) pays
            # for the mask; bulk sub-chunks take the unmasked path.
            shape = (chunk_rows, _LANES)
            row = mask_row_base + jax.lax.broadcasted_iota(jnp.int32, shape, 0)
            lane = jax.lax.broadcasted_iota(jnp.int32, shape, 1)
            ok = row * _LANES + lane < valid_pix
            zero = jnp.zeros_like(ce)
            ce = jnp.where(ok, ce, zero)
            p1 = jnp.where(ok, p1, zero)
            tf = jnp.where(ok, tf, zero)

        def tree(v):  # (chunk_rows,128) -> (acc_rows,128); vreg-wise adds only
            if chunk_rows == acc_rows:
                return v
            return v.reshape(chunk_rows // acc_rows, acc_rows, _LANES).sum(axis=0)

        return tree(ce), tree(p1 * tf), tree(p1), tree(tf)

    zeros = jnp.zeros((acc_rows, _LANES), jnp.float32)
    init = (zeros, zeros, zeros, zeros)

    if whole_image:
        # r_tile == rows_any == chunk_rows: one sub-chunk covers one whole
        # image and the row grid has a single step, so maskedness is static
        # (true only on the ragged H*W fallback). Image overhang along the
        # image-block axis is handled by the dynamic loop bound, not masks.
        mask_base = 0 if rows_full != rows_any else None
        imgs_here = jnp.minimum(n_tile, n_imgs - ni * n_tile)

        def img_body(img, accs):
            part = chunk_sums(img, 0, mask_base)
            return tuple(a + p for a, p in zip(accs, part))

        accs = jax.lax.fori_loop(0, imgs_here, img_body, init)
        for k in range(4):
            out_ref[0, k] += accs[k]
    else:
        # n_tile == 1: one image per block; rows streamed in sub-chunks.
        row_base = ri * r_tile
        full_rows_here = jnp.clip(rows_full - row_base, 0, r_tile)
        any_rows_here = jnp.clip(rows_any - row_base, 0, r_tile)
        n_full = full_rows_here // chunk_rows
        rem_rows = any_rows_here - n_full * chunk_rows   # rows needing a mask

        def chunk_body(c, accs):
            c0 = pl.multiple_of(c * chunk_rows, 8)
            part = chunk_sums(0, c0, None)
            return tuple(a + p for a, p in zip(accs, part))

        accs = jax.lax.fori_loop(0, n_full, chunk_body, init)
        for k in range(4):
            out_ref[0, k] += accs[k]

        @pl.when(rem_rows > 0)
        def _():
            c0 = pl.multiple_of(n_full * chunk_rows, 8)
            part = chunk_sums(0, c0, row_base + c0)
            for k in range(4):
                out_ref[0, k] += part[k]


def combined_loss(pred, target, ce_weight=CE_WEIGHT, dice_weight=DICE_WEIGHT,
                  smooth=SMOOTH):
    """pred: (N, 2, H, W) float logits; target: (N, H, W) int class in {0,1}."""
    N, C, H, W = pred.shape
    assert C == 2, "CombinedLoss dice path assumes binary (2-channel) logits"
    HW = H * W
    P = N * HW

    rows_any = pl.cdiv(HW, _LANES)     # rows (of 128 px) per image, ceil
    rows_full = HW // _LANES           # fully populated rows per image
    if HW % _LANES == 0:
        # Fast path: metadata-only reshapes, no wrapper-side copies, native
        # dtypes (bf16 pred / int8 target pass straight through).
        pred4 = pred.reshape(N, 2, rows_any, _LANES)
        t3 = target.reshape(N, rows_any, _LANES)
    else:
        # Ragged fallback: a single padded copy of each input on an (N,2,HW)
        # view; the kernel lane-masks the final partial row of each image.
        # TODO(synk): a fully copy-free ragged path needs an Element-offset
        # BlockSpec or a small tail kernel.
        pad = rows_any * _LANES - HW
        pred4 = jnp.pad(pred.reshape(N, 2, HW),
                        ((0, 0), (0, 0), (0, pad))).reshape(N, 2, rows_any, _LANES)
        t3 = jnp.pad(target.reshape(N, HW),
                     ((0, 0), (0, pad))).reshape(N, rows_any, _LANES)

    R = rows_any
    max_rows = _max_block_rows()
    whole_image = R < _CHUNK_ROWS
    if whole_image:
        # Small images: pack several whole images per block; keep >= 2 image
        # blocks when possible so the 'parallel' axis can use both v7x cores.
        r_tile = R
        chunk_rows = R
        n_tile = max(1, min(N, max_rows // R))
        if N > 1:
            n_tile = min(n_tile, pl.cdiv(N, 2))
    else:
        # Large images: one image per block, rows streamed in 256-row chunks.
        n_tile = 1
        chunk_rows = _CHUNK_ROWS
        r_tile = min(max_rows, (R // chunk_rows) * chunk_rows)
    acc_rows = 8 if chunk_rows % 8 == 0 else chunk_rows
    grid = (pl.cdiv(N, n_tile), pl.cdiv(R, r_tile))

    kernel = functools.partial(
        _loss_sums_kernel,
        n_tile=n_tile, r_tile=r_tile, chunk_rows=chunk_rows, acc_rows=acc_rows,
        n_imgs=N, valid_pix=HW, rows_full=rows_full, rows_any=R,
        whole_image=whole_image)

    partials = pl.pallas_call(
        kernel,
        out_shape=jax.ShapeDtypeStruct((grid[0], 4, acc_rows, _LANES),
                                       jnp.float32),
        grid=grid,
        in_specs=[
            pl.BlockSpec((n_tile, 2, r_tile, _LANES),
                         lambda ni, ri: (ni, 0, ri, 0)),
            pl.BlockSpec((n_tile, r_tile, _LANES),
                         lambda ni, ri: (ni, ri, 0)),
        ],
        out_specs=pl.BlockSpec((1, 4, acc_rows, _LANES),
                               lambda ni, ri: (ni, 0, 0, 0)),
        compiler_params=pltpu.CompilerParams(
            # Image-block axis is parallel (per-block partial sums) so v7x's
            # two TensorCores split the reduction; the row axis carries the
            # resident accumulator and stays 'arbitrary'.
            dimension_semantics=("parallel", "arbitrary"),
            vmem_limit_bytes=32 * 1024 * 1024),
    )(pred4, t3)

    sums = jnp.sum(partials, axis=(0, 2, 3))          # (4,) tiny XLA reduce
    sum_ce, intersection, sum_p1, sum_t = sums[0], sums[1], sums[2], sums[3]
    ce = sum_ce / P              # nn.CrossEntropyLoss default: mean over pixels
    dice = 1.0 - (2.0 * intersection + smooth) / (sum_p1 + sum_t + smooth)
    return ce_weight * ce + dice_weight * dice


def _reference_loss(pred, target, ce_weight=CE_WEIGHT, dice_weight=DICE_WEIGHT,
                    smooth=SMOOTH):
    """Pure-JAX reference matching the PyTorch forward."""
    logits = jnp.moveaxis(pred, 1, -1)                  # (N, H, W, C)
    logp = jax.nn.log_softmax(logits, axis=-1)
    ce = -jnp.mean(jnp.take_along_axis(
        logp, target[..., None].astype(jnp.int32), axis=-1))
    p1 = jax.nn.softmax(logits, axis=-1)[..., 1]
    tf = target.astype(jnp.float32)
    inter = jnp.sum(p1 * tf)
    dice = 1.0 - (2.0 * inter + smooth) / (jnp.sum(p1) + jnp.sum(tf) + smooth)
    return ce_weight * ce + dice_weight * dice


def _run_case(key, n, h, w, rtol, atol):
    k1, k2 = jax.random.split(key)
    pred = jax.random.normal(k1, (n, 2, h, w), dtype=jnp.float32)
    target = jax.random.randint(k2, (n, h, w), 0, 2, dtype=jnp.int32)
    out = jax.block_until_ready(combined_loss(pred, target))
    ref = _reference_loss(pred, target)
    assert jnp.allclose(out, ref, rtol=rtol, atol=atol), (n, h, w, out, ref)
    return out


if __name__ == "__main__":
    key = jax.random.PRNGKey(0)
    k1, k2, k3 = jax.random.split(key, 3)
    _run_case(k1, 2, 16, 16, 1e-5, 1e-5)     # small: whole-image blocks
    _run_case(k2, 2, 192, 192, 1e-4, 1e-4)   # row-chunked + partial last block
    _run_case(k3, 2, 15, 15, 1e-5, 1e-5)     # ragged H*W: masked-tail path
    print("KERNEL_OK")
</pallas_src>

<mosaic_0001>
module attributes {stable_mosaic.version = 11 : i64} {
  func.func @_loss_sums_kernel(%arg0: i32, %arg1: i32, %arg2: memref<1x2x2x128xf32, #tpu.memory_space<vmem>>, %arg3: memref<1x2x128xi32, #tpu.memory_space<vmem>>, %arg4: memref<1x4x2x128xf32, #tpu.memory_space<vmem>>) attributes {dimension_semantics = [#tpu.dimension_semantics<parallel>, #tpu.dimension_semantics<arbitrary>], iteration_bounds = array<i64: 2, 1>, scalar_prefetch = 0 : i64, scratch_operands = 0 : i64, tpu.core_type = #tpu.core_type<tc>, window_params = [{transform_indices = @transform_0, window_bounds = array<i64: 1, 2, 2, 128>}, {transform_indices = @transform_1, window_bounds = array<i64: 1, 2, 128>}, {transform_indices = @transform_2, window_bounds = array<i64: 1, 4, 2, 128>}]} {
    %c0_i32 = arith.constant 0 : i32
    %0 = arith.cmpi eq, %arg1, %c0_i32 : i32
    %1 = arith.extui %0 : i1 to i32
    %c0_i32_0 = arith.constant 0 : i32
    %2 = arith.cmpi ne, %1, %c0_i32_0 : i32
    scf.if %2 {
      %cst_32 = arith.constant 0.000000e+00 : f32
      %34 = vector.broadcast %cst_32 : f32 to vector<1x4x2x128xf32>
      %c0_33 = arith.constant 0 : index
      %c0_34 = arith.constant 0 : index
      %c0_35 = arith.constant 0 : index
      %c0_36 = arith.constant 0 : index
      %35 = vector.load %arg4[%c0_33, %c0_34, %c0_35, %c0_36] : memref<1x4x2x128xf32, #tpu.memory_space<vmem>>, vector<1x4x2x128xf32>
      tpu.vector_store %arg4[%c0_33, %c0_34, %c0_35, %c0_36], %34 {strides = array<i32>} : memref<1x4x2x128xf32, #tpu.memory_space<vmem>>, vector<1x4x2x128xf32>,
    } else {
    }
    %cst = arith.constant 0.000000e+00 : f32
    %3 = vector.broadcast %cst : f32 to vector<2x128xf32>
    %c1_i32 = arith.constant 1 : i32
    %4 = arith.muli %arg0, %c1_i32 : i32
    %c2_i32 = arith.constant 2 : i32
    %5 = arith.subi %c2_i32, %4 : i32
    %c1_i32_1 = arith.constant 1 : i32
    %6 = arith.minsi %c1_i32_1, %5 : i32
    %c0_i32_2 = arith.constant 0 : i32
    %7 = arith.subi %6, %c0_i32_2 : i32
    %8 = arith.addi %c0_i32_2, %7 : i32
    %c1_i32_3 = arith.constant 1 : i32
    %9:4 = scf.for %arg5 = %c0_i32_2 to %8 step %c1_i32_3 iter_args(%arg6 = %3, %arg7 = %3, %arg8 = %3, %arg9 = %3) -> (vector<2x128xf32>, vector<2x128xf32>, vector<2x128xf32>, vector<2x128xf32>)  : i32 {
      %34 = arith.index_cast %arg5 : i32 to index
      %c0_32 = arith.constant 0 : index
      %c0_33 = arith.constant 0 : index
      %c0_34 = arith.constant 0 : index
      %35 = vector.load %arg2[%34, %c0_32, %c0_33, %c0_34] : memref<1x2x2x128xf32, #tpu.memory_space<vmem>>, vector<1x1x2x128xf32>
      %36 = vector.shape_cast %35 : vector<1x1x2x128xf32> to vector<2x128xf32>
      %37 = arith.index_cast %arg5 : i32 to index
      %c1_35 = arith.constant 1 : index
      %c0_36 = arith.constant 0 : index
      %c0_37 = arith.constant 0 : index
      %38 = vector.load %arg2[%37, %c1_35, %c0_36, %c0_37] : memref<1x2x2x128xf32, #tpu.memory_space<vmem>>, vector<1x1x2x128xf32>
      %39 = vector.shape_cast %38 : vector<1x1x2x128xf32> to vector<2x128xf32>
      %40 = arith.index_cast %arg5 : i32 to index
      %c0_38 = arith.constant 0 : index
      %c0_39 = arith.constant 0 : index
      %41 = vector.load %arg3[%40, %c0_38, %c0_39] : memref<1x2x128xi32, #tpu.memory_space<vmem>>, vector<1x2x128xi32>
      %42 = vector.shape_cast %41 : vector<1x2x128xi32> to vector<2x128xi32>
      %43 = arith.sitofp %42 : vector<2x128xi32> to vector<2x128xf32>
      %44 = arith.subf %39, %36 : vector<2x128xf32>
      %45 = math.absf %44 : vector<2x128xf32>
      %cst_40 = arith.constant 0.000000e+00 : f32
      %46 = vector.broadcast %cst_40 : f32 to vector<2x128xf32>
      %47 = arith.subf %46, %45 : vector<2x128xf32>
      %48 = math.exp %47 : vector<2x128xf32>
      %cst_41 = arith.constant 1.000000e+00 : f32
      %49 = vector.broadcast %cst_41 : f32 to vector<2x128xf32>
      %50 = arith.addf %49, %48 : vector<2x128xf32>
      %51 = math.log %50 : vector<2x128xf32>
      %cst_42 = arith.constant 5.000000e-01 : f32
      %52 = vector.broadcast %cst_42 : f32 to vector<2x128xf32>
      %53 = arith.cmpf ogt, %43, %52 : vector<2x128xf32>
      %cst_43 = arith.constant 0.000000e+00 : f32
      %54 = vector.broadcast %cst_43 : f32 to vector<2x128xf32>
      %55 = arith.subf %54, %44 : vector<2x128xf32>
      %56 = arith.select %53, %55, %44 : vector<2x128xi1>, vector<2x128xf32>
      %cst_44 = arith.constant 0.000000e+00 : f32
      %57 = vector.broadcast %cst_44 : f32 to vector<2x128xf32>
      %58 = arith.maximumf %56, %57 : vector<2x128xf32>
      %59 = arith.addf %58, %51 : vector<2x128xf32>
      %cst_45 = arith.constant 0.000000e+00 : f32
      %60 = vector.broadcast %cst_45 : f32 to vector<2x128xf32>
      %61 = arith.minimumf %44, %60 : vector<2x128xf32>
      %62 = arith.subf %61, %51 : vector<2x128xf32>
      %63 = math.exp %62 : vector<2x128xf32>
      %64 = arith.mulf %63, %43 : vector<2x128xf32>
      %65 = arith.addf %arg6, %59 : vector<2x128xf32>
      %66 = arith.addf %arg7, %64 : vector<2x128xf32>
      %67 = arith.addf %arg8, %63 : vector<2x128xf32>
      %68 = arith.addf %arg9, %43 : vector<2x128xf32>
      scf.yield %65, %66, %67, %68 : vector<2x128xf32>, vector<2x128xf32>, vector<2x128xf32>, vector<2x128xf32>
    }
    %c0 = arith.constant 0 : index
    %c0_4 = arith.constant 0 : index
    %c0_5 = arith.constant 0 : index
    %c0_6 = arith.constant 0 : index
    %10 = vector.load %arg4[%c0, %c0_4, %c0_5, %c0_6] : memref<1x4x2x128xf32, #tpu.memory_space<vmem>>, vector<1x1x2x128xf32>
    %11 = vector.shape_cast %10 : vector<1x1x2x128xf32> to vector<2x128xf32>
    %12 = arith.addf %11, %9#0 : vector<2x128xf32>
    %c0_7 = arith.constant 0 : index
    %c0_8 = arith.constant 0 : index
    %c0_9 = arith.constant 0 : index
    %c0_10 = arith.constant 0 : index
    %13 = vector.load %arg4[%c0_7, %c0_8, %c0_9, %c0_10] : memref<1x4x2x128xf32, #tpu.memory_space<vmem>>, vector<1x1x2x128xf32>
    %14 = vector.shape_cast %13 : vector<1x1x2x128xf32> to vector<2x128xf32>
    %15 = vector.shape_cast %12 : vector<2x128xf32> to vector<1x1x2x128xf32>
    tpu.vector_store %arg4[%c0_7, %c0_8, %c0_9, %c0_10], %15 {strides = array<i32>} : memref<1x4x2x128xf32, #tpu.memory_space<vmem>>, vector<1x1x2x128xf32>,
    %c0_11 = arith.constant 0 : index
    %c1 = arith.constant 1 : index
    %c0_12 = arith.constant 0 : index
    %c0_13 = arith.constant 0 : index
    %16 = vector.load %arg4[%c0_11, %c1, %c0_12, %c0_13] : memref<1x4x2x128xf32, #tpu.memory_space<vmem>>, vector<1x1x2x128xf32>
    %17 = vector.shape_cast %16 : vector<1x1x2x128xf32> to vector<2x128xf32>
    %18 = arith.addf %17, %9#1 : vector<2x128xf32>
    %c0_14 = arith.constant 0 : index
    %c1_15 = arith.constant 1 : index
    %c0_16 = arith.constant 0 : index
    %c0_17 = arith.constant 0 : index
    %19 = vector.load %arg4[%c0_14, %c1_15, %c0_16, %c0_17] : memref<1x4x2x128xf32, #tpu.memory_space<vmem>>, vector<1x1x2x128xf32>
    %20 = vector.shape_cast %19 : vector<1x1x2x128xf32> to vector<2x128xf32>
    %21 = vector.shape_cast %18 : vector<2x128xf32> to vector<1x1x2x128xf32>
    tpu.vector_store %arg4[%c0_14, %c1_15, %c0_16, %c0_17], %21 {strides = array<i32>} : memref<1x4x2x128xf32, #tpu.memory_space<vmem>>, vector<1x1x2x128xf32>,
    %c0_18 = arith.constant 0 : index
    %c2 = arith.constant 2 : index
    %c0_19 = arith.constant 0 : index
    %c0_20 = arith.constant 0 : index
    %22 = vector.load %arg4[%c0_18, %c2, %c0_19, %c0_20] : memref<1x4x2x128xf32, #tpu.memory_space<vmem>>, vector<1x1x2x128xf32>
    %23 = vector.shape_cast %22 : vector<1x1x2x128xf32> to vector<2x128xf32>
    %24 = arith.addf %23, %9#2 : vector<2x128xf32>
    %c0_21 = arith.constant 0 : index
    %c2_22 = arith.constant 2 : index
    %c0_23 = arith.constant 0 : index
    %c0_24 = arith.constant 0 : index
    %25 = vector.load %arg4[%c0_21, %c2_22, %c0_23, %c0_24] : memref<1x4x2x128xf32, #tpu.memory_space<vmem>>, vector<1x1x2x128xf32>
    %26 = vector.shape_cast %25 : vector<1x1x2x128xf32> to vector<2x128xf32>
    %27 = vector.shape_cast %24 : vector<2x128xf32> to vector<1x1x2x128xf32>
    tpu.vector_store %arg4[%c0_21, %c2_22, %c0_23, %c0_24], %27 {strides = array<i32>} : memref<1x4x2x128xf32, #tpu.memory_space<vmem>>, vector<1x1x2x128xf32>,
    %c0_25 = arith.constant 0 : index
    %c3 = arith.constant 3 : index
    %c0_26 = arith.constant 0 : index
    %c0_27 = arith.constant 0 : index
    %28 = vector.load %arg4[%c0_25, %c3, %c0_26, %c0_27] : memref<1x4x2x128xf32, #tpu.memory_space<vmem>>, vector<1x1x2x128xf32>
    %29 = vector.shape_cast %28 : vector<1x1x2x128xf32> to vector<2x128xf32>
    %30 = arith.addf %29, %9#3 : vector<2x128xf32>
    %c0_28 = arith.constant 0 : index
    %c3_29 = arith.constant 3 : index
    %c0_30 = arith.constant 0 : index
    %c0_31 = arith.constant 0 : index
    %31 = vector.load %arg4[%c0_28, %c3_29, %c0_30, %c0_31] : memref<1x4x2x128xf32, #tpu.memory_space<vmem>>, vector<1x1x2x128xf32>
    %32 = vector.shape_cast %31 : vector<1x1x2x128xf32> to vector<2x128xf32>
    %33 = vector.shape_cast %30 : vector<2x128xf32> to vector<1x1x2x128xf32>
    tpu.vector_store %arg4[%c0_28, %c3_29, %c0_30, %c0_31], %33 {strides = array<i32>} : memref<1x4x2x128xf32, #tpu.memory_space<vmem>>, vector<1x1x2x128xf32>,
    return
  }
  func.func @transform_0(%arg0: i32, %arg1: i32) -> (i32, i32, i32, i32) {
    %c0_i32 = arith.constant 0 : i32
    %c0_i32_0 = arith.constant 0 : i32
    %c0_i32_1 = arith.constant 0 : i32
    return %arg0, %c0_i32, %arg1, %c0_i32_0 : i32, i32, i32, i32
  }
  func.func @transform_1(%arg0: i32, %arg1: i32) -> (i32, i32, i32) {
    %c0_i32 = arith.constant 0 : i32
    %c0_i32_0 = arith.constant 0 : i32
    return %arg0, %arg1, %c0_i32 : i32, i32, i32
  }
  func.func @transform_2(%arg0: i32, %arg1: i32) -> (i32, i32, i32, i32) {
    %c0_i32 = arith.constant 0 : i32
    %c0_i32_0 = arith.constant 0 : i32
    %c0_i32_1 = arith.constant 0 : i32
    %c0_i32_2 = arith.constant 0 : i32
    return %arg0, %c0_i32, %c0_i32_0, %c0_i32_1 : i32, i32, i32, i32
  }
}

</mosaic_0001>

<llo_original>
// kernel: tpu_custom_call.1
$region0: #{tpu_custom_call.1}
  #allocation0 [shape = 'u32[]', space=smem, size = 0x4, offset = 0x4, fixed_abs, tag = 'smem constant byte address 0x4 - core index']
  #allocation1 [shape = 'u32[72,128]{1,0:T(1,128)}', space=vmem, size = 0x9000, scoped, tag = 'internal scratch']
  %s0 = inlined_call_operand.hbm [shape: f32[2,2,2,128], index: 0, kind: input, shape index: {}]
  %s1 = inlined_call_operand.hbm [shape: s32[2,2,128], index: 1, kind: input, shape index: {}]
  %s2 = inlined_call_operand.hbm [shape: f32[2,4,2,128], index: 2, kind: output, shape index: {}]
  %s3 = sld [smem:[#allocation0]]
  $region60: #{tpu_custom_call.1} parent=0
    _
  %s5 = ssub.s32 1, %s3
  %s6 = scalar_select 0, %s5, %s3
  $region1: #{tpu_custom_call.1} parent=0
    #allocation2 [shape = 'u8[4096]{0}', space=vmem, size = 0x1000, scoped, tag = 'input window, operand 0']
    #allocation3 [shape = 's32[2]{0}', space=sflag, size = 0x8, scoped, tag = 'scoped memory for tpu_custom_call.1']
    #allocation4 [shape = 's32[2]{0}', space=sflag, size = 0x8, scoped, tag = 'scoped memory for tpu_custom_call.1']
    #allocation5 [shape = 'u8[2048]{0}', space=vmem, size = 0x800, scoped, tag = 'input window, operand 1']
    #allocation6 [shape = 's32[2]{0}', space=sflag, size = 0x8, scoped, tag = 'scoped memory for tpu_custom_call.1']
    #allocation7 [shape = 'u8[8192]{0}', space=vmem, size = 0x2000, scoped, tag = 'output window, operand 0']
    %7 = vsyncpa [#allocation3], 0
    %s8 = scalar_lea.sflag [#allocation3], 1
    %9 = vsyncpa %s8, 0
    %10 = vsyncpa [#allocation6], 0
    %s11 = scalar_lea.sflag [#allocation6], 1
    %12 = vsyncpa %s11, 0
    %13 = vsyncpa [#allocation4], 0
    %s14 = scalar_lea.sflag [#allocation4], 1
    %15 = vsyncpa %s14, 0
    loop: start=0, step=1, limit=4
    $region2: #{tpu_custom_call.1} parent=1 // loop_pre_header
      _
    $region3: #{tpu_custom_call.1} parent=1 // loop_header
      %s17 = sphi 0, %s21
      %p18 = scmp.ge.s32.totalorder %s17, 4
      %s24 = sphi 0, %s36
      %s25 = sphi 0, %s32
      %s26 = sphi 0, %s24
      %s27 = sphi 0, %s25
      %s28 = sphi 0, %s26
      %s29 = sphi 0, %s27
      %s41 = sphi 0, %s43
      %s44 = sphi 0, %s41
      %s45 = sphi 0, %s44
      %s61 = sphi 0, %s45
      %s69 = sphi 0, %s71
      %s72 = sphi 0, %s69
      %s73 = sphi 0, %s72
      %s89 = sphi 0, %s73
      %s95 = sphi 0, %s97
      %s98 = sphi 0, %s95
      %s99 = sphi 0, %s98
      %s115 = sphi 0, %s99
    $region4: #{tpu_custom_call.1} parent=1 // loop_header_branch
      %20 = sbr.rel (%p18) target = $region8
    $region5: #{tpu_custom_call.1} parent=1 // loop_body
      %s22 = ssub.s32 %s17, 1
      %s23 = ssub.s32 %s17, 2
      %s30 = sadd.s32 1, %s25
      %p31 = scmp.ge.s32.totalorder %s30, 1
      %s32 = scalar_select %p31, 0, %s30
      %s33 = sadd.s32 1, %s24
      %s34 = scalar_select %p31, %s33, %s24
      %p35 = scmp.ge.s32.totalorder %s34, 2
      %s36 = scalar_select %p35, 0, %s34
      %s37 = ssub.s32 %s24, %s36
      %s38 = ssub.s32 %s25, %s32
      %s39 = sor.u32 %s37, %s38
      %p40 = scmp.eq.s32.totalorder %s39, 0
      %s42 = sadd.s32 %s41, 1
      %s43 = scalar_select %p40, %s41, %s42
      %p46 = pneg %p40
      %p47 = scmp.eq.s32.totalorder %s17, 1
      %p48 = por %p46, %p47
      %p49 = scmp.ne.s32.totalorder %s41, %s44
      %p50 = scmp.eq.s32.totalorder %s17, 0
      %p51 = por %p49, %p50
      %p52 = scmp.ne.s32.totalorder %s41, %s44
      %p53 = scmp.eq.s32.totalorder %s22, 1
      %p54 = por %p52, %p53
      %p55 = scmp.ne.s32.totalorder %s44, %s45
      %p56 = scmp.eq.s32.totalorder %s22, 0
      %p57 = por %p55, %p56
      %p58 = scmp.ne.s32.totalorder %s44, %s45
      %p59 = scmp.eq.s32.totalorder %s23, 1
      %p60 = por %p58, %p59
      %p62 = scmp.ne.s32.totalorder %s45, %s61
      %p63 = scmp.eq.s32.totalorder %s23, 0
      %p64 = por %p62, %p63
      %s65 = ssub.s32 %s24, %s36
      %s66 = ssub.s32 %s25, %s32
      %s67 = sor.u32 %s65, %s66
      %p68 = scmp.eq.s32.totalorder %s67, 0
      %s70 = sadd.s32 %s69, 1
      %s71 = scalar_select %p68, %s69, %s70
      %p74 = pneg %p68
      %p75 = scmp.eq.s32.totalorder %s17, 1
      %p76 = por %p74, %p75
      %p77 = scmp.ne.s32.totalorder %s69, %s72
      %p78 = scmp.eq.s32.totalorder %s17, 0
      %p79 = por %p77, %p78
      %p80 = scmp.ne.s32.totalorder %s69, %s72
      %p81 = scmp.eq.s32.totalorder %s22, 1
      %p82 = por %p80, %p81
      %p83 = scmp.ne.s32.totalorder %s72, %s73
      %p84 = scmp.eq.s32.totalorder %s22, 0
      %p85 = por %p83, %p84
      %p86 = scmp.ne.s32.totalorder %s72, %s73
      %p87 = scmp.eq.s32.totalorder %s23, 1
      %p88 = por %p86, %p87
      %p90 = scmp.ne.s32.totalorder %s73, %s89
      %p91 = scmp.eq.s32.totalorder %s23, 0
      %p92 = por %p90, %p91
      %s93 = ssub.s32 %s24, %s36
      %p94 = scmp.eq.s32.totalorder %s93, 0
      %s96 = sadd.s32 %s95, 1
      %s97 = scalar_select %p94, %s95, %s96
      %p100 = pneg %p94
      %p101 = scmp.eq.s32.totalorder %s17, 1
      %p102 = por %p100, %p101
      %p103 = scmp.ne.s32.totalorder %s95, %s98
      %p104 = scmp.eq.s32.totalorder %s17, 0
      %p105 = por %p103, %p104
      %p106 = scmp.ne.s32.totalorder %s95, %s98
      %p107 = scmp.eq.s32.totalorder %s22, 1
      %p108 = por %p106, %p107
      %p109 = scmp.ne.s32.totalorder %s98, %s99
      %p110 = scmp.eq.s32.totalorder %s22, 0
      %p111 = por %p109, %p110
      %p112 = scmp.ne.s32.totalorder %s98, %s99
      %p113 = scmp.eq.s32.totalorder %s23, 1
      %p114 = por %p112, %p113
      %p116 = scmp.ne.s32.totalorder %s99, %s115
      %p117 = scmp.eq.s32.totalorder %s23, 0
      %p118 = por %p116, %p117
      %p119 = scmp.le.s32.totalorder 1, %s17
      %p120 = scmp.lt.s32.totalorder %s17, 3
      %p121 = pnand %p119, %p120
      %p122 = pneg %p121
      // Predicated region
      $region9: #{tpu_custom_call.1} parent=5 // pred_check
        _
      $region10: #{tpu_custom_call.1} parent=5 // pred_check_branch
        %124 = sbr.rel (%p121) target = $region12
      $region11: #{tpu_custom_call.1} parent=5 // pred_region
        %s125 = ssub.s32 %s17, 1
      $region12: #{tpu_custom_call.1} parent=5 // pred_fallthru
        _
      %p126 = scmp.lt.s32.totalorder %s17, 2
      // Predicated region
      $region13: #{tpu_custom_call.1} parent=5 // pred_check
        %p127 = pneg %p126
      $region14: #{tpu_custom_call.1} parent=5 // pred_check_branch
        %129 = sbr.rel (%p127) target = $region16
      $region15: #{tpu_custom_call.1} parent=5 // pred_region
        // Predicated region
        $region17: #{tpu_custom_call.1} parent=15 // pred_check
          %p130 = pneg %p51
        $region18: #{tpu_custom_call.1} parent=15 // pred_check_branch
          %132 = sbr.rel (%p130) target = $region20
        $region19: #{tpu_custom_call.1} parent=15 // pred_region
          %s133 = sand.u32 %s41, 1
          %s134 = scalar_lea.sflag [#allocation3], %s133
          %s135 = sand.u32 %s41, 1
          %s136 = smul.addr %s135, 4
          %s137 = scalar_lea.vmem [#allocation2], %s136
          %139 = vsyncadd %s134, 0
          %s140 = smul.addr %s24, 2
          %s141 = sadd.s32 %s25, %s140
          %s142 = smul.addr %s141, 2
          %s143 = scalar_lea.hbm %s0, %s142
          %s144 = sshll.u32 %s143, 4
          %s145 = int_to_ptr.hbm [resolvable:$true] %s144
          %s146 = sshll.u32 %s137, 4
          %s147 = int_to_ptr.vmem [resolvable:$true] %s146
          %152 = dma.hbm_to_vmem [thread:$0]  %s145, 64, %s147, %s134, 32, 32, 2
        $region20: #{tpu_custom_call.1} parent=15 // pred_fallthru
          _
        // Predicated region
        $region21: #{tpu_custom_call.1} parent=15 // pred_check
          %p153 = pneg %p79
        $region22: #{tpu_custom_call.1} parent=15 // pred_check_branch
          %155 = sbr.rel (%p153) target = $region24
        $region23: #{tpu_custom_call.1} parent=15 // pred_region
          %s156 = sand.u32 %s69, 1
          %s157 = scalar_lea.sflag [#allocation6], %s156
          %s158 = sand.u32 %s69, 1
          %s159 = smul.addr %s158, 2
          %s160 = scalar_lea.vmem [#allocation5], %s159
          %162 = vsyncadd %s157, 0
          %s163 = sadd.s32 %s25, %s24
          %s164 = smul.addr %s163, 2
          %s165 = scalar_lea.hbm %s1, %s164
          %s167 = sshll.u32 %s165, 4
          %s168 = int_to_ptr.hbm [resolvable:$true] %s167
          %s169 = sshll.u32 %s160, 4
          %s170 = int_to_ptr.vmem [resolvable:$true] %s169
          %172 = dma.hbm_to_vmem [thread:$0]  %s168, 32, %s170, %s157
        $region24: #{tpu_custom_call.1} parent=15 // pred_fallthru
          _
      $region16: #{tpu_custom_call.1} parent=5 // pred_fallthru
        _
      %p173 = scmp.le.s32.totalorder 1, %s17
      %p174 = scmp.lt.s32.totalorder %s17, 3
      %p175 = pnand %p173, %p174
      %p176 = pneg %p175
      // Predicated region
      $region25: #{tpu_custom_call.1} parent=5 // pred_check
        _
      $region26: #{tpu_custom_call.1} parent=5 // pred_check_branch
        %178 = sbr.rel (%p175) target = $region28
      $region27: #{tpu_custom_call.1} parent=5 // pred_region
        %s179 = ssub.s32 %s17, 1
        %s180 = sand.u32 %s44, 1
        %s181 = scalar_lea.sflag [#allocation3], %s180
        %s182 = sand.u32 %s44, 1
        %s183 = smul.addr %s182, 4
        %s184 = scalar_lea.vmem [#allocation2], %s183
        // Predicated region
        $region29: #{tpu_custom_call.1} parent=27 // pred_check
          %p185 = pneg %p57
        $region30: #{tpu_custom_call.1} parent=27 // pred_check_branch
          %187 = sbr.rel (%p185) target = $region32
        $region31: #{tpu_custom_call.1} parent=27 // pred_region
          %189 = dma.done %s181, 64
        $region32: #{tpu_custom_call.1} parent=27 // pred_fallthru
          _
        %s190 = sand.u32 %s72, 1
        %s191 = scalar_lea.sflag [#allocation6], %s190
        %s192 = sand.u32 %s72, 1
        %s193 = smul.addr %s192, 2
        %s194 = scalar_lea.vmem [#allocation5], %s193
        // Predicated region
        $region33: #{tpu_custom_call.1} parent=27 // pred_check
          %p195 = pneg %p85
        $region34: #{tpu_custom_call.1} parent=27 // pred_check_branch
          %197 = sbr.rel (%p195) target = $region36
        $region35: #{tpu_custom_call.1} parent=27 // pred_region
          %199 = dma.done %s191, 32
        $region36: #{tpu_custom_call.1} parent=27 // pred_fallthru
          _
        %s200 = sand.u32 %s44, 1
        %s201 = scalar_lea.sflag [#allocation3], %s200
        %s202 = sand.u32 %s44, 1
        %s203 = smul.addr %s202, 4
        %s204 = scalar_lea.vmem [#allocation2], %s203
        %p205 = pneg %p57
        %p206 = pneg %p54
        %s207 = sand.u32 %s72, 1
        %s208 = scalar_lea.sflag [#allocation6], %s207
        %s209 = sand.u32 %s72, 1
        %s210 = smul.addr %s209, 2
        %s211 = scalar_lea.vmem [#allocation5], %s210
        %p212 = pneg %p85
        %p213 = pneg %p82
        %p214 = pneg %p111
        %p215 = pneg %p108
        %s216 = sand.u32 %s98, 1
        %s217 = scalar_lea.sflag [#allocation4], %s216
        %s218 = sand.u32 %s98, 1
        %s219 = smul.addr %s218, 8
        %s220 = scalar_lea.vmem [#allocation7], %s219
        %p221 = scmp.eq.s32.totalorder %s27, 0
        // Predicated region
        $region37: #{tpu_custom_call.1} parent=27 // pred_check
          %p222 = pneg %p221
        $region38: #{tpu_custom_call.1} parent=27 // pred_check_branch
          %224 = sbr.rel (%p222) target = $region40
        $region39: #{tpu_custom_call.1} parent=27 // pred_region
          %225 = vst [vmem:[%s220] sm:$0x3] 0.0
          %226 = vst [vmem:[%s220 + $0x2] sm:$0x3] 0.0
          %227 = vst [vmem:[%s220 + $0x4] sm:$0x3] 0.0
          %228 = vst [vmem:[%s220 + $0x6] sm:$0x3] 0.0
        $region40: #{tpu_custom_call.1} parent=27 // pred_fallthru
          _
        %s229 = ssub.s32 2, %s26
        %p230 = scmp.lt.s32.totalorder %s229, 1
        %s231 = scalar_select %p230, %s229, 1
        // While loop
        $region41: #{tpu_custom_call.1} parent=27 // loop_pre_header
          _
        $region42: #{tpu_custom_call.1} parent=27 // loop_header
          %s233 = sphi 0, %s235
          %p234 = scmp.ge.s32.totalorder %s233, %s231
          %v238 = vphi 0.0, %v270
          %v239 = vphi 0.0, %v271
          %v240 = vphi 0.0, %v272
          %v241 = vphi 0.0, %v273
        $region43: #{tpu_custom_call.1} parent=27 // loop_header_branch
          %237 = sbr.rel (%p234) target = $region47
        $region44: #{tpu_custom_call.1} parent=27 // loop_body
          %s242 = smul.u32 %s233, 4
          %s243 = scalar_lea.vmem %s184, %s242 [#allocation2]
          %v244 = vld [vmem:[%s243] sm:$0x3]
          %s245 = sadd.s32 2, %s242
          %s246 = scalar_lea.vmem %s184, %s245 [#allocation2]
          %v247 = vld [vmem:[%s246] sm:$0x3]
          %s248 = smul.u32 %s233, 2
          %s249 = scalar_lea.vmem %s194, %s248 [#allocation5]
          %v250 = vld [vmem:[%s249] sm:$0x3]
          %v251 = vcvt.s32.f32 %v250
          %v252 = vsub.f32 %v247, %v244
          %v253 = vand.u32 2147483647, %v252
          %v254 = vsub.f32 0.0, %v253
          %v255 = vmul.f32 %v254, 1.442695
          %v256 = vpow.pop %v255
          %v257 = vadd.f32 %v256, 1.0
          %v258 = vlog2.pop %v257
          %v259 = vmul.f32 %v258, 0.6931472
          %vm260 = vcmp.gt.f32.partialorder %v251, 0.5
          %v261 = vsub.f32 0.0, %v252
          %v262 = vsel %vm260, %v261, %v252
          %v263 = vmax.f32 %v262, 0.0
          %v264 = vadd.f32 %v263, %v259
          %v265 = vmin.f32 %v252, 0.0
          %v266 = vsub.f32 %v265, %v259
          %v267 = vmul.f32 %v266, 1.442695
          %v268 = vpow.pop %v267
          %v269 = vmul.f32 %v268, %v251
          %v270 = vadd.f32 %v238, %v264
          %v271 = vadd.f32 %v239, %v269
          %v272 = vadd.f32 %v240, %v268
          %v273 = vadd.f32 %v241, %v251
        $region45: #{tpu_custom_call.1} parent=27 // loop_footer
          %s235 = sadd.s32 %s233, 1
        $region46: #{tpu_custom_call.1} parent=27 // loop_footer_branch
          %232 = sbr.rel target = $region42
        $region47: #{tpu_custom_call.1} parent=27 // loop_exit
          _
        %v274 = vld [vmem:[%s220] sm:$0x3]
        %v275 = vadd.f32 %v274, %v238
        %276 = vst [vmem:[%s220] sm:$0x3] %v275
        %s277 = scalar_lea.vmem %s220, 2 [#allocation7]
        %v278 = vld [vmem:[%s277] sm:$0x3]
        %v279 = vadd.f32 %v278, %v239
        %280 = vst [vmem:[%s277] sm:$0x3] %v279
        %s281 = scalar_lea.vmem %s220, 4 [#allocation7]
        %v282 = vld [vmem:[%s281] sm:$0x3]
        %v283 = vadd.f32 %v282, %v240
        %284 = vst [vmem:[%s281] sm:$0x3] %v283
        %s285 = scalar_lea.vmem %s220, 6 [#allocation7]
        %v286 = vld [vmem:[%s285] sm:$0x3]
        %v287 = vadd.f32 %v286, %v241
        %288 = vst [vmem:[%s285] sm:$0x3] %v287
        %s289 = sand.u32 %s98, 1
        %s290 = scalar_lea.sflag [#allocation4], %s289
        %s291 = sand.u32 %s98, 1
        %s292 = smul.addr %s291, 8
        %s293 = scalar_lea.vmem [#allocation7], %s292
        // Predicated region
        $region48: #{tpu_custom_call.1} parent=27 // pred_check
          %p294 = pneg %p108
        $region49: #{tpu_custom_call.1} parent=27 // pred_check_branch
          %296 = sbr.rel (%p294) target = $region51
        $region50: #{tpu_custom_call.1} parent=27 // pred_region
          %298 = vsyncadd %s290, 0
          %s299 = smul.addr %s26, 4
          %s300 = smul.addr %s299, 2
          %s301 = scalar_lea.hbm %s2, %s300
          %s302 = sshll.u32 %s293, 4
          %s303 = int_to_ptr.vmem [resolvable:$true] %s302
          %s304 = sshll.u32 %s301, 4
          %s305 = int_to_ptr.hbm [resolvable:$true] %s304
          %310 = dma.vmem_to_hbm [thread:$0]  %s303, 128, %s305, %s290, 32, 32, 2
        $region51: #{tpu_custom_call.1} parent=27 // pred_fallthru
          _
      $region28: #{tpu_custom_call.1} parent=5 // pred_fallthru
        _
      %p311 = scmp.le.s32.totalorder 2, %s17
      // Predicated region
      $region52: #{tpu_custom_call.1} parent=5 // pred_check
        %p312 = pneg %p311
      $region53: #{tpu_custom_call.1} parent=5 // pred_check_branch
        %314 = sbr.rel (%p312) target = $region55
      $region54: #{tpu_custom_call.1} parent=5 // pred_region
        %s315 = ssub.s32 %s17, 2
        // Predicated region
        $region56: #{tpu_custom_call.1} parent=54 // pred_check
          %p316 = pneg %p114
        $region57: #{tpu_custom_call.1} parent=54 // pred_check_branch
          %318 = sbr.rel (%p316) target = $region59
        $region58: #{tpu_custom_call.1} parent=54 // pred_region
          %s319 = sand.u32 %s99, 1
          %s320 = scalar_lea.sflag [#allocation4], %s319
          %s321 = sand.u32 %s99, 1
          %s322 = smul.addr %s321, 8
          %s323 = scalar_lea.vmem [#allocation7], %s322
          %325 = dma.done %s320, 128
        $region59: #{tpu_custom_call.1} parent=54 // pred_fallthru
          _
      $region55: #{tpu_custom_call.1} parent=5 // pred_fallthru
        _
    $region6: #{tpu_custom_call.1} parent=1 // loop_footer
      %s21 = sadd.s32 1, %s17
    $region7: #{tpu_custom_call.1} parent=1 // loop_footer_branch
      %16 = sbr.rel target = $region3
    $region8: #{tpu_custom_call.1} parent=1 // loop_exit
      _
    %326 = vsyncpa [#allocation3], 1
    %s327 = scalar_lea.sflag [#allocation3], 1
    %328 = vsyncpa %s327, 1
    %329 = vsyncpa [#allocation6], 1
    %s330 = scalar_lea.sflag [#allocation6], 1
    %331 = vsyncpa %s330, 1
    %332 = vsyncpa [#allocation4], 1
    %s333 = scalar_lea.sflag [#allocation4], 1
    %334 = vsyncpa %s333, 1

</llo_original>
